<compile_context>
chip_gen: v5e
topology: v5e:2x2
jax: 0.10.0
libtpu: 0.0.40
codegen_flags: <defaults>
</compile_context>

<pallas_src>
import functools

import jax
import jax.numpy as jnp
from jax.experimental import pallas as pl
from jax.experimental.pallas import tpu as pltpu

# --- model config (mirrors config['model'][...] of the original script) ------
INPUT_SIZE = 32     # fc1 in_features
HIDDEN_SIZE = 64    # fc1 out_features / fc2 in_features
OUTPUT_SIZE = 16    # fc2 out_features
BATCH = 8

# --- lane-padded parameter layout --------------------------------------------
LANES = 128          # TPU lane width; slab feature dims padded to this
HID_P = 128          # HIDDEN_SIZE padded to a full lane tile (W2 row count)
BIAS_ROWS = 8        # one sublane tile of identical bias rows

# Packed slab rows:  [ W1 (32x128) | b1 (8x128) | W2 (128x128) | b2 (8x128) ]
# Every offset is a multiple of 8, so in-kernel static slices are
# sublane-tile aligned (no relayout copies).
W1_OFF = 0
B1_OFF = W1_OFF + INPUT_SIZE          # 32
W2_OFF = B1_OFF + BIAS_ROWS           # 40
B2_OFF = W2_OFF + HID_P               # 168
PROWS = B2_OFF + BIAS_ROWS            # 176  (88 KiB f32 / 44 KiB bf16)


def _mlp_kernel(x_ref, p_ref, o_ref, *, compute_dtype):
    """Fused fc1 -> ReLU -> fc2 on one [batch_tile, feature] tile.

    x_ref : (TB, INPUT_SIZE)   VMEM
    p_ref : (PROWS, 128)       VMEM  packed {W1, b1, W2, b2}, zero lane-padded
    o_ref : (TB, OUTPUT_SIZE)  VMEM  real (unpadded) output block
    """
    tb = x_ref.shape[0]

    x = x_ref[...]
    w1 = p_ref[W1_OFF:W1_OFF + INPUT_SIZE, :]        # (32, 128)
    w2 = p_ref[W2_OFF:W2_OFF + HID_P, :]             # (128, 128)
    b1 = p_ref[B1_OFF:B1_OFF + BIAS_ROWS, :]         # (8, 128) identical rows
    b2 = p_ref[B2_OFF:B2_OFF + BIAS_ROWS, :]
    if tb != BIAS_ROWS:               # static (trace-time) choice per batch tile
        b1 = b1[0:1, :]               # broadcast a single row over the batch tile
        b2 = b2[0:1, :]

    # fc1: MXU matmul with f32 accumulation; bias + ReLU stay in f32 on the VPU.
    h = jnp.dot(x.astype(compute_dtype), w1.astype(compute_dtype),
                preferred_element_type=jnp.float32)
    h = jnp.maximum(h + b1.astype(jnp.float32), 0.0)
    # fc2 (padded hidden lanes of W2 are zero -> exact).
    # TODO(synk): contracting only the 64 valid hidden lanes would halve fc2
    # MXU work, but at these sizes MXU time is hidden under DMA; skipped.
    y = jnp.dot(h.astype(compute_dtype), w2.astype(compute_dtype),
                preferred_element_type=jnp.float32)
    # Store only the 16 real output lanes: HBM writeback is 64 B/row instead
    # of 512 B/row, and no separate slice pass is needed afterwards.
    o_ref[...] = (y[:, :OUTPUT_SIZE]
                  + b2[:, :OUTPUT_SIZE].astype(jnp.float32)).astype(o_ref.dtype)


def pack_params(w1, b1, w2, b2, *, dtype=jnp.float32):
    """Pack {W1 (In,H), b1 (H,), W2 (H,Out), b2 (Out,)} (x @ W convention, i.e.
    the TRANSPOSE of PyTorch's nn.Linear.weight) into one lane-padded slab.
    Zero padding keeps the forward pass exact. dtype=bf16 halves weight DMA
    (opt-in, not bit-exact vs f32)."""
    if w1.shape != (INPUT_SIZE, HIDDEN_SIZE) or w2.shape != (HIDDEN_SIZE, OUTPUT_SIZE):
        raise ValueError(
            "pack_params expects x@W-convention weights: "
            f"w1 {(INPUT_SIZE, HIDDEN_SIZE)}, w2 {(HIDDEN_SIZE, OUTPUT_SIZE)}; "
            f"got {w1.shape} / {w2.shape}. Transpose nn.Linear.weight first.")
    if b1.shape != (HIDDEN_SIZE,) or b2.shape != (OUTPUT_SIZE,):
        raise ValueError(f"bad bias shapes {b1.shape} / {b2.shape}")
    p = jnp.zeros((PROWS, LANES), dtype)
    p = p.at[W1_OFF:W1_OFF + INPUT_SIZE, :HIDDEN_SIZE].set(w1.astype(dtype))
    p = p.at[B1_OFF:B1_OFF + BIAS_ROWS, :HIDDEN_SIZE].set(
        jnp.broadcast_to(b1[None, :].astype(dtype), (BIAS_ROWS, HIDDEN_SIZE)))
    p = p.at[W2_OFF:W2_OFF + HIDDEN_SIZE, :OUTPUT_SIZE].set(w2.astype(dtype))
    p = p.at[B2_OFF:B2_OFF + BIAS_ROWS, :OUTPUT_SIZE].set(
        jnp.broadcast_to(b2[None, :].astype(dtype), (BIAS_ROWS, OUTPUT_SIZE)))
    return p


def _round_up(n, m):
    return ((n + m - 1) // m) * m


def _default_batch_tile(B):
    # >=512 rows/step amortizes the ~0.35us fixed per-step cost on single-TC
    # chips (v5e/v6e, measured 29%->85% of HBM roofline going 128->512 rows);
    # the cdiv(B, 8) term keeps the grid length >= 8 for very large B so the
    # two v7x TensorCores each get >= 4 pipelined steps. VMEM is never the
    # constraint here (<1 MiB per step even at 4096 rows).
    return int(min(4096, max(512, _round_up(pl.cdiv(B, 8), 8))))


def net_forward(x, packed_params, *, batch_tile=None, compute_dtype=jnp.float32):
    """forward(x) = fc2(relu(fc1(x))), x: (B, INPUT_SIZE) -> (B, OUTPUT_SIZE) f32.

    B <= batch_tile : grid-free call, whole arrays as VMEM blocks (minimal
                      fixed overhead -- the dominant cost at this size).
    B  > batch_tile : 1-D "parallel" grid over batch (v7x: both TensorCores),
                      packed-weight block VMEM-resident, grid = cdiv(B, tile)
                      with host-side zero-padding so any B is accepted.
    """
    B = x.shape[0]
    assert x.shape[1] == INPUT_SIZE, x.shape
    kernel = functools.partial(_mlp_kernel, compute_dtype=compute_dtype)

    if batch_tile is None:
        batch_tile = _default_batch_tile(B)
    batch_tile = _round_up(int(batch_tile), 8)   # sublane-tile aligned rows

    if B <= batch_tile:
        # Grid-free path: no per-step overhead, single parameter DMA.
        return pl.pallas_call(
            kernel,
            out_shape=jax.ShapeDtypeStruct((B, OUTPUT_SIZE), jnp.float32),
            in_specs=[
                pl.BlockSpec(memory_space=pltpu.MemorySpace.VMEM),
                pl.BlockSpec(memory_space=pltpu.MemorySpace.VMEM),
            ],
            out_specs=pl.BlockSpec(memory_space=pltpu.MemorySpace.VMEM),
        )(x, packed_params)

    # Gridded, batch-parallel path (any B: pad to a tile multiple).
    grid_len = pl.cdiv(B, batch_tile)
    Bp = grid_len * batch_tile
    xp = x if Bp == B else jnp.pad(x, ((0, Bp - B), (0, 0)))

    def run(param_spec):
        return pl.pallas_call(
            kernel,
            out_shape=jax.ShapeDtypeStruct((Bp, OUTPUT_SIZE), jnp.float32),
            grid=(grid_len,),
            in_specs=[
                pl.BlockSpec((batch_tile, INPUT_SIZE), lambda i: (i, 0)),
                param_spec,
            ],
            out_specs=pl.BlockSpec((batch_tile, OUTPUT_SIZE), lambda i: (i, 0)),
            compiler_params=pltpu.CompilerParams(
                dimension_semantics=("parallel",)),
        )(xp, packed_params)

    try:
        # Weights never change across grid steps -> request single buffering
        # (saves one prologue DMA and 88 KiB of VMEM).
        out = run(pl.BlockSpec((PROWS, LANES), lambda i: (0, 0),
                               pipeline_mode=pl.Buffered(1)))
    except Exception:
        # Fallback for jax versions without pipeline_mode / Buffered(1): the
        # default double-buffered spec still DMAs the slab only once since the
        # block index is constant across steps.
        out = run(pl.BlockSpec((PROWS, LANES), lambda i: (0, 0)))

    return out if Bp == B else out[:B]


def init_params(key):
    """nn.Linear-style uniform init; weights stored transposed ([in, out])."""
    k1, k2, k3, k4 = jax.random.split(key, 4)
    lim1 = 1.0 / jnp.sqrt(INPUT_SIZE)
    lim2 = 1.0 / jnp.sqrt(HIDDEN_SIZE)
    w1 = jax.random.uniform(k1, (INPUT_SIZE, HIDDEN_SIZE), jnp.float32, -lim1, lim1)
    b1 = jax.random.uniform(k2, (HIDDEN_SIZE,), jnp.float32, -lim1, lim1)
    w2 = jax.random.uniform(k3, (HIDDEN_SIZE, OUTPUT_SIZE), jnp.float32, -lim2, lim2)
    b2 = jax.random.uniform(k4, (OUTPUT_SIZE,), jnp.float32, -lim2, lim2)
    return w1, b1, w2, b2


def _reference(x, w1, b1, w2, b2):
    h = jnp.maximum(x @ w1 + b1, 0.0)
    return h @ w2 + b2


if __name__ == "__main__":
    key = jax.random.PRNGKey(0)
    kx, kp = jax.random.split(key)
    w1, b1, w2, b2 = init_params(kp)
    packed = pack_params(w1, b1, w2, b2)

    # 1) Small batch: grid-free path.
    x = jax.random.normal(kx, (BATCH, INPUT_SIZE), jnp.float32)
    out = jax.block_until_ready(net_forward(x, packed))
    ref = _reference(x, w1, b1, w2, b2)
    assert out.shape == (BATCH, OUTPUT_SIZE)
    assert jnp.allclose(out, ref, atol=1e-5, rtol=1e-5)

    # 2) Larger batch: batch-parallel grid of length 4 (>=2 steps per TC on v7x).
    xb = jax.random.normal(kx, (512, INPUT_SIZE), jnp.float32)
    outb = jax.block_until_ready(net_forward(xb, packed, batch_tile=128))
    refb = _reference(xb, w1, b1, w2, b2)
    assert outb.shape == (512, OUTPUT_SIZE)
    assert jnp.allclose(outb, refb, atol=1e-5, rtol=1e-5)

    # 3) Ragged batch (not a tile multiple): cdiv grid + host-side padding.
    xr = jax.random.normal(kx, (300, INPUT_SIZE), jnp.float32)
    outr = jax.block_until_ready(net_forward(xr, packed, batch_tile=128))
    refr = _reference(xr, w1, b1, w2, b2)
    assert outr.shape == (300, OUTPUT_SIZE)
    assert jnp.allclose(outr, refr, atol=1e-5, rtol=1e-5)

    print("KERNEL_OK")
</pallas_src>

<mosaic_0001>
module attributes {stable_mosaic.version = 11 : i64} {
  func.func @_mlp_kernel(%arg0: memref<8x32xf32, #tpu.memory_space<vmem>>, %arg1: memref<176x128xf32, #tpu.memory_space<vmem>>, %arg2: memref<8x16xf32, #tpu.memory_space<vmem>>) attributes {dimension_semantics = [], scalar_prefetch = 0 : i64, scratch_operands = 0 : i64, tpu.core_type = #tpu.core_type<tc>} {
    %c0 = arith.constant 0 : index
    %c0_0 = arith.constant 0 : index
    %0 = vector.load %arg0[%c0, %c0_0] : memref<8x32xf32, #tpu.memory_space<vmem>>, vector<8x32xf32>
    %c0_1 = arith.constant 0 : index
    %c0_2 = arith.constant 0 : index
    %1 = vector.load %arg1[%c0_1, %c0_2] : memref<176x128xf32, #tpu.memory_space<vmem>>, vector<32x128xf32>
    %c40 = arith.constant 40 : index
    %c0_3 = arith.constant 0 : index
    %2 = vector.load %arg1[%c40, %c0_3] : memref<176x128xf32, #tpu.memory_space<vmem>>, vector<128x128xf32>
    %c32 = arith.constant 32 : index
    %c0_4 = arith.constant 0 : index
    %3 = vector.load %arg1[%c32, %c0_4] : memref<176x128xf32, #tpu.memory_space<vmem>>, vector<8x128xf32>
    %c168 = arith.constant 168 : index
    %c0_5 = arith.constant 0 : index
    %4 = vector.load %arg1[%c168, %c0_5] : memref<176x128xf32, #tpu.memory_space<vmem>>, vector<8x128xf32>
    %cst = arith.constant dense<0.000000e+00> : vector<8x128xf32>
    %5 = tpu.matmul %0, %1, %cst {dimension_numbers = #tpu.dot_dimension_numbers<[1], [0], [0], [1], [0, 0, 1, 1], [], []>} : vector<8x32xf32>, vector<32x128xf32>, vector<8x128xf32> -> vector<8x128xf32>
    %6 = arith.addf %5, %3 : vector<8x128xf32>
    %cst_6 = arith.constant 0.000000e+00 : f32
    %7 = vector.broadcast %cst_6 : f32 to vector<8x128xf32>
    %8 = arith.maximumf %6, %7 : vector<8x128xf32>
    %cst_7 = arith.constant dense<0.000000e+00> : vector<8x128xf32>
    %9 = tpu.matmul %8, %2, %cst_7 {dimension_numbers = #tpu.dot_dimension_numbers<[1], [0], [0], [1], [0, 0, 1, 1], [], []>} : vector<8x128xf32>, vector<128x128xf32>, vector<8x128xf32> -> vector<8x128xf32>
    %10 = vector.extract_strided_slice %9 {offsets = [0, 0], sizes = [8, 16], strides = [1, 1]} : vector<8x128xf32> to vector<8x16xf32>
    %11 = vector.extract_strided_slice %4 {offsets = [0, 0], sizes = [8, 16], strides = [1, 1]} : vector<8x128xf32> to vector<8x16xf32>
    %12 = arith.addf %10, %11 : vector<8x16xf32>
    %c0_8 = arith.constant 0 : index
    %c0_9 = arith.constant 0 : index
    %13 = vector.load %arg2[%c0_8, %c0_9] : memref<8x16xf32, #tpu.memory_space<vmem>>, vector<8x16xf32>
    tpu.vector_store %arg2[%c0_8, %c0_9], %12 {strides = array<i32>} : memref<8x16xf32, #tpu.memory_space<vmem>>, vector<8x16xf32>,
    return
  }
}

</mosaic_0001>

<llo_original>
// kernel: tpu_custom_call.1
$region0: #{tpu_custom_call.1}
  #allocation0 [shape = 'u32[]', space=smem, size = 0x4, offset = 0x4, fixed_abs, tag = 'smem constant byte address 0x4 - core index']
  #allocation1 [shape = 'u32[72,128]{1,0:T(1,128)}', space=vmem, size = 0x9000, scoped, tag = 'internal scratch']
  %s0 = inlined_call_operand.hbm [shape: f32[8,32], index: 0, kind: input, shape index: {}]
  %s1 = inlined_call_operand.hbm [shape: f32[176,128], index: 1, kind: input, shape index: {}]
  %s2 = inlined_call_operand.hbm [shape: f32[8,16], index: 2, kind: output, shape index: {}]
  %s3 = sld [smem:[#allocation0]]
  $region26: #{tpu_custom_call.1} parent=0
    _
  %s5 = ssub.s32 1, %s3
  %s6 = scalar_select 0, %s5, %s3
  $region1: #{tpu_custom_call.1} parent=0
    #allocation2 [shape = 'u8[4096]{0}', space=vmem, size = 0x1000, scoped, tag = 'input window, operand 0, single buffered']
    #allocation3 [shape = 's32[1]{0}', space=sflag, size = 0x4, scoped, tag = 'scoped memory for tpu_custom_call.1']
    #allocation4 [shape = 's32[1]{0}', space=sflag, size = 0x4, scoped, tag = 'scoped memory for tpu_custom_call.1']
    #allocation5 [shape = 'u8[90112]{0}', space=vmem, size = 0x16000, scoped, tag = 'input window, operand 1, single buffered']
    #allocation6 [shape = 's32[1]{0}', space=sflag, size = 0x4, scoped, tag = 'scoped memory for tpu_custom_call.1']
    #allocation7 [shape = 'u8[4096]{0}', space=vmem, size = 0x1000, scoped, tag = 'output window, operand 0, single buffered']
    %7 = vsyncpa [#allocation3], 0
    %8 = vsyncpa [#allocation6], 0
    %9 = vsyncpa [#allocation4], 0
    // Predicated region
    $region2: #{tpu_custom_call.1} parent=1 // pred_check
      _
    $region3: #{tpu_custom_call.1} parent=1 // pred_check_branch
      %11 = sbr.rel (0) target = $region5
    $region4: #{tpu_custom_call.1} parent=1 // pred_region
      %13 = vsyncadd [#allocation3], 0
      %s15 = sshll.u32 %s0, 4
      %s16 = int_to_ptr.hbm [resolvable:$true] %s15
      %s17 = sshll.u32 [#allocation2], 4
      %s18 = int_to_ptr.vmem [resolvable:$true] %s17
      %20 = dma.hbm_to_vmem [thread:$0]  %s16, 128, %s18, [#allocation3]
    $region5: #{tpu_custom_call.1} parent=1 // pred_fallthru
      _
    // Predicated region
    $region6: #{tpu_custom_call.1} parent=1 // pred_check
      _
    $region7: #{tpu_custom_call.1} parent=1 // pred_check_branch
      %22 = sbr.rel (0) target = $region9
    $region8: #{tpu_custom_call.1} parent=1 // pred_region
      %24 = vsyncadd [#allocation6], 0
      %s25 = sshll.u32 %s1, 4
      %s26 = int_to_ptr.hbm [resolvable:$true] %s25
      %s27 = sshll.u32 [#allocation5], 4
      %s28 = int_to_ptr.vmem [resolvable:$true] %s27
      %33 = dma.hbm_to_vmem [thread:$0]  %s26, 2816, %s28, [#allocation6], 128, 128, 8
    $region9: #{tpu_custom_call.1} parent=1 // pred_fallthru
      _
    // Predicated region
    $region10: #{tpu_custom_call.1} parent=1 // pred_check
      _
    $region11: #{tpu_custom_call.1} parent=1 // pred_check_branch
      %35 = sbr.rel (0) target = $region13
    $region12: #{tpu_custom_call.1} parent=1 // pred_region
      %37 = dma.done [#allocation3], 128
    $region13: #{tpu_custom_call.1} parent=1 // pred_fallthru
      _
    // Predicated region
    $region14: #{tpu_custom_call.1} parent=1 // pred_check
      _
    $region15: #{tpu_custom_call.1} parent=1 // pred_check_branch
      %39 = sbr.rel (0) target = $region17
    $region16: #{tpu_custom_call.1} parent=1 // pred_region
      %41 = dma.done [#allocation6], 2816
    $region17: #{tpu_custom_call.1} parent=1 // pred_fallthru
      _
    %v42 = vld [vmem:[#allocation2] sm:$0xff]
    %v43 = vld [vmem:[#allocation5] sm:$0xff]
    %v44 = vld [vmem:[#allocation5 + $0x8] sm:$0xff]
    %v45 = vld [vmem:[#allocation5 + $0x10] sm:$0xff]
    %v46 = vld [vmem:[#allocation5 + $0x18] sm:$0xff]
    %v47 = vld [vmem:[#allocation5 + $0x28] sm:$0xff]
    %v48 = vld [vmem:[#allocation5 + $0x30] sm:$0xff]
    %v49 = vld [vmem:[#allocation5 + $0x38] sm:$0xff]
    %v50 = vld [vmem:[#allocation5 + $0x40] sm:$0xff]
    %v51 = vld [vmem:[#allocation5 + $0x48] sm:$0xff]
    %v52 = vld [vmem:[#allocation5 + $0x50] sm:$0xff]
    %v53 = vld [vmem:[#allocation5 + $0x58] sm:$0xff]
    %v54 = vld [vmem:[#allocation5 + $0x60] sm:$0xff]
    %v55 = vld [vmem:[#allocation5 + $0x68] sm:$0xff]
    %v56 = vld [vmem:[#allocation5 + $0x70] sm:$0xff]
    %v57 = vld [vmem:[#allocation5 + $0x78] sm:$0xff]
    %v58 = vld [vmem:[#allocation5 + $0x80] sm:$0xff]
    %v59 = vld [vmem:[#allocation5 + $0x88] sm:$0xff]
    %v60 = vld [vmem:[#allocation5 + $0x90] sm:$0xff]
    %v61 = vld [vmem:[#allocation5 + $0x98] sm:$0xff]
    %v62 = vld [vmem:[#allocation5 + $0xa0] sm:$0xff]
    %v63 = vld [vmem:[#allocation5 + $0x20] sm:$0xff]
    %v64 = vld [vmem:[#allocation5 + $0xa8] sm:$0xff]
    %vm65 = vcmask 261120
    %v67 = vsel %vm65, %v42, 0
    %69 = vmatpush.msra.mxu0 0.0
    %70 = vmatpush.msra.mxu0 0.0
    %71 = vmatpush.msra.mxu0 0.0
    %72 = vmatpush.msra.mxu0 0.0
    %73 = vmatpush.msra.mxu0 0.0
    %74 = vmatpush.msra.mxu0 0.0
    %75 = vmatpush.msra.mxu0 0.0
    %76 = vmatpush.msra.mxu0 0.0
    %77 = vmatpush.msra.mxu0 0.0
    %78 = vmatpush.msra.mxu0 0.0
    %79 = vmatpush.msra.mxu0 0.0
    %80 = vmatpush.msra.mxu0 0.0
    %81 = vmatpush.msra.mxu0 %v46
    %82 = vmatpush.msra.mxu0 %v45
    %83 = vmatpush.msra.mxu0 %v44
    %84 = vmatpush.msra.mxu0 %v43
    %85 = vmatmul.f32.gmra.mxu0 %v67
    %v86 = vpop.f32.mrf.mxu0
    %v87 = vadd.f32 %v63, %v86
    %88 = vdwg.mxu0
    %v89 = vmax.f32 %v87, 0.0
    %90 = vmatpush.msra.mxu0 %v62
    %91 = vmatpush.msra.mxu0 %v61
    %92 = vmatpush.msra.mxu0 %v60
    %93 = vmatpush.msra.mxu0 %v59
    %94 = vmatpush.msra.mxu0 %v58
    %95 = vmatpush.msra.mxu0 %v57
    %96 = vmatpush.msra.mxu0 %v56
    %97 = vmatpush.msra.mxu0 %v55
    %98 = vmatpush.msra.mxu0 %v54
    %99 = vmatpush.msra.mxu0 %v53
    %100 = vmatpush.msra.mxu0 %v52
    %101 = vmatpush.msra.mxu0 %v51
    %102 = vmatpush.msra.mxu0 %v50
    %103 = vmatpush.msra.mxu0 %v49
    %104 = vmatpush.msra.mxu0 %v48
    %105 = vmatpush.msra.mxu0 %v47
    %106 = vmatmul.f32.gmra.mxu0 %v89
    %v107 = vpop.f32.mrf.mxu0
    %v108 = vadd.f32 0.0, %v107
    %109 = vdwg.mxu0
    %v110 = vadd.f32 %v108, %v64
    %vm111 = vcmask 130048
    %112 = vst.msk [vmem:[#allocation7] sm:$0xff] %vm111, %v110
    // Predicated region
    $region18: #{tpu_custom_call.1} parent=1 // pred_check
      _
    $region19: #{tpu_custom_call.1} parent=1 // pred_check_branch
      %114 = sbr.rel (0) target = $region21
    $region20: #{tpu_custom_call.1} parent=1 // pred_region
      %116 = vsyncadd [#allocation4], 0
      %s118 = sshll.u32 [#allocation7], 4
      %s119 = int_to_ptr.vmem [resolvable:$true] %s118
      %s120 = sshll.u32 %s2, 4
      %s121 = int_to_ptr.hbm [resolvable:$true] %s120
      %123 = dma.vmem_to_hbm [thread:$0]  %s119, 128, %s121, [#allocation4]
    $region21: #{tpu_custom_call.1} parent=1 // pred_fallthru
      _
    // Predicated region
    $region22: #{tpu_custom_call.1} parent=1 // pred_check
      _
    $region23: #{tpu_custom_call.1} parent=1 // pred_check_branch
      %125 = sbr.rel (0) target = $region25
    $region24: #{tpu_custom_call.1} parent=1 // pred_region
      %127 = dma.done [#allocation4], 128
    $region25: #{tpu_custom_call.1} parent=1 // pred_fallthru
      _
    %128 = vsyncpa [#allocation3], 1
    %129 = vsyncpa [#allocation6], 1
    %130 = vsyncpa [#allocation4], 1

</llo_original>
